<compile_context>
chip_gen: v6e
topology: v6e:2x2x1
jax: 0.10.0
libtpu: 0.0.40
codegen_flags: <defaults>
</compile_context>

<pallas_src>
import jax
import jax.numpy as jnp
from jax.experimental import pallas as pl
from jax.experimental.pallas import tpu as pltpu


def _round_up(x, m):
    return (x + m - 1) // m * m


# ---------------------------------------------------------------------------
# Pass 1: AdaptiveAvgPool2d((1,1))  ->  (N, C2) f32
#   x_ref: (TN, C2, HW) in the input's native dtype (HW on lanes, C2 on
#   sublanes), o_ref: (TN, C2) f32.
# ---------------------------------------------------------------------------
def _pool_kernel(x_ref, o_ref):
    o_ref[...] = jnp.mean(x_ref[...].astype(jnp.float32), axis=-1)


# ---------------------------------------------------------------------------
# Pass 2: Linear + BatchNorm1d(eval) + ReLU fused.
#   p_ref:     (TN, C2)   f32 pooled features
#   w_ref:     (C2, TOUT) bf16 folded weight = fc_w.T * bn_scale
#   shift_ref: (1, TOUT)  f32 folded shift  = fc_b*scale + beta - mean*scale
#   o_ref:     (TN, TOUT) output dtype = x.dtype
# ---------------------------------------------------------------------------
def _fc_bn_relu_kernel(p_ref, w_ref, shift_ref, o_ref):
    y = jnp.dot(p_ref[...].astype(jnp.bfloat16), w_ref[...],
                preferred_element_type=jnp.float32)          # MXU, f32 accum
    y = jnp.maximum(y + shift_ref[...], 0.0)                 # bias+BN, ReLU
    # TODO(synk): nn.Dropout is identity in eval mode; training-mode dropout
    # (pltpu.prng_* masking) intentionally not applied here.
    o_ref[...] = y.astype(o_ref.dtype)


def relative_loc_neck(x, fc_w, fc_b, bn_gamma, bn_beta, bn_mean, bn_var,
                      eps=1e-5):
    """x: (N, 2*in_channels, H, W) NCHW. Returns (N, out_channels) in x.dtype."""
    N, C2, H, W = x.shape
    OUT = fc_w.shape[0]
    HW = H * W
    x_itemsize = jnp.dtype(x.dtype).itemsize
    out_dtype = x.dtype

    # ---- parameter folding: bias + eval-mode BN -> bf16 weight, f32 shift ----
    scale = (bn_gamma / jnp.sqrt(bn_var + eps)).astype(jnp.float32)       # (OUT,)
    w_folded = (fc_w.astype(jnp.float32).T * scale[None, :]).astype(jnp.bfloat16)
    shift = (fc_b * scale + bn_beta - bn_mean * scale).astype(jnp.float32)

    # ===================== Pass 1: spatial mean pool =====================
    # Budget ~6 MiB per x buffer (double-buffered ~12 MiB) -> fits every
    # generation's scoped VMEM once vmem_limit_bytes is set explicitly.
    row_bytes = C2 * HW * x_itemsize + C2 * 4           # x row + pooled row
    TNp = max(8, ((6 << 20) // max(row_bytes, 1)) // 8 * 8)
    TNp = min(TNp, _round_up(N, 8))
    Np = _round_up(N, TNp)

    x3 = x.reshape(N, C2, HW)                            # free reshape, no transpose
    if Np > N:
        x3 = jnp.pad(x3, ((0, Np - N), (0, 0), (0, 0)))  # zero rows -> sliced off later

    pool_vmem = 2 * TNp * row_bytes + (4 << 20)
    pooled = pl.pallas_call(
        _pool_kernel,
        out_shape=jax.ShapeDtypeStruct((Np, C2), jnp.float32),
        grid=(Np // TNp,),
        in_specs=[pl.BlockSpec((TNp, C2, HW), lambda i: (i, 0, 0))],
        out_specs=pl.BlockSpec((TNp, C2), lambda i: (i, 0)),
        compiler_params=pltpu.CompilerParams(
            dimension_semantics=("parallel",),
            vmem_limit_bytes=int(min(max(pool_vmem, 32 << 20), 64 << 20))),
    )(x3)

    # ===================== Pass 2: fc + BN(eval) + ReLU =====================
    OUTp = _round_up(OUT, 128)                           # lane-dense stores
    TOUT = OUTp if OUTp <= 512 else 512                  # bf16 weight tile <= C2*512*2 B
    OUTp = _round_up(OUTp, TOUT)

    # Batch tile: keep the pooled tile (f32) around <=2 MiB per buffer.
    TNg = max(8, ((2 << 20) // max(C2 * 4, 1)) // 8 * 8)
    TNg = min(TNg, Np)
    Ng = _round_up(Np, TNg)
    if Ng > Np:
        pooled = jnp.pad(pooled, ((0, Ng - Np), (0, 0)))

    w_p = jnp.pad(w_folded, ((0, 0), (0, OUTp - OUT)))
    shift_p = jnp.pad(shift, (0, OUTp - OUT)).reshape(1, OUTp)

    gemm_vmem = (2 * TNg * C2 * 4 + 2 * C2 * TOUT * 2 + 2 * OUTp * 4
                 + 2 * TNg * TOUT * jnp.dtype(out_dtype).itemsize + (4 << 20))
    out = pl.pallas_call(
        _fc_bn_relu_kernel,
        out_shape=jax.ShapeDtypeStruct((Ng, OUTp), out_dtype),
        # grid = (OUT tiles, batch tiles): batch innermost -> the weight block
        # index (0, j) is constant over the inner loop, so the bf16 weight
        # tile stays VMEM-resident and is never re-streamed per batch tile.
        grid=(OUTp // TOUT, Ng // TNg),
        in_specs=[
            pl.BlockSpec((TNg, C2), lambda j, i: (i, 0)),      # pooled
            pl.BlockSpec((C2, TOUT), lambda j, i: (0, j)),     # folded weight (resident)
            pl.BlockSpec((1, TOUT), lambda j, i: (0, j)),      # folded shift
        ],
        out_specs=pl.BlockSpec((TNg, TOUT), lambda j, i: (i, j)),
        compiler_params=pltpu.CompilerParams(
            dimension_semantics=("parallel", "parallel"),
            vmem_limit_bytes=int(min(max(gemm_vmem, 32 << 20), 64 << 20))),
    )(pooled, w_p, shift_p)

    # Padded rows/cols hold relu(shift)/zeros; slice them off before use.
    return out[:N, :OUT]


if __name__ == "__main__":
    # Module config: in_channels=4 -> fc input = in_channels*2 = 8,
    # out_channels=32, with_avg_pool=True, sync_bn=False (eval mode).
    N, in_channels, out_channels, H, W = 2, 4, 32, 16, 16
    C2 = in_channels * 2

    key = jax.random.PRNGKey(0)
    kx, kw = jax.random.split(key)

    x = jax.random.normal(kx, (N, C2, H, W), dtype=jnp.float32)

    # Param init mirroring init_weights(init_linear='normal', std=0.005,
    # bias=0.1); BN affine = (1, 0), running stats = (0, 1).
    fc_w = 0.005 * jax.random.normal(kw, (out_channels, C2), dtype=jnp.float32)
    fc_b = jnp.full((out_channels,), 0.1, dtype=jnp.float32)
    bn_gamma = jnp.ones((out_channels,), dtype=jnp.float32)
    bn_beta = jnp.zeros((out_channels,), dtype=jnp.float32)
    bn_mean = jnp.zeros((out_channels,), dtype=jnp.float32)
    bn_var = jnp.ones((out_channels,), dtype=jnp.float32)

    out = relative_loc_neck(x, fc_w, fc_b, bn_gamma, bn_beta, bn_mean, bn_var)
    out = jax.block_until_ready(out)

    # Pure-JAX f32 reference (same eval-mode semantics). The kernel only
    # rounds the folded weight and pooled features to bf16 for the MXU, so
    # tolerances are tight.
    pooled_ref = jnp.mean(x.reshape(N, C2, H * W), axis=-1)
    ref = pooled_ref @ fc_w.T + fc_b
    ref = (ref - bn_mean) / jnp.sqrt(bn_var + 1e-5) * bn_gamma + bn_beta
    ref = jnp.maximum(ref, 0.0)

    assert out.shape == (N, out_channels)
    assert jnp.allclose(out, ref, atol=1e-3, rtol=1e-3), (
        f"max abs err {jnp.max(jnp.abs(out - ref))}")

    print("KERNEL_OK")
</pallas_src>

<mosaic_0001>
module attributes {stable_mosaic.version = 11 : i64} {
  func.func @_pool_kernel(%arg0: i32, %arg1: memref<8x8x256xf32, #tpu.memory_space<vmem>>, %arg2: memref<8x8xf32, #tpu.memory_space<vmem>>) attributes {dimension_semantics = [#tpu.dimension_semantics<parallel>], iteration_bounds = array<i64: 1>, scalar_prefetch = 0 : i64, scratch_operands = 0 : i64, tpu.core_type = #tpu.core_type<tc>, window_params = [{transform_indices = @transform_0, window_bounds = array<i64: 8, 8, 256>}, {transform_indices = @transform_1, window_bounds = array<i64: 8, 8>}]} {
    %c0 = arith.constant 0 : index
    %c0_0 = arith.constant 0 : index
    %c0_1 = arith.constant 0 : index
    %0 = vector.load %arg1[%c0, %c0_0, %c0_1] : memref<8x8x256xf32, #tpu.memory_space<vmem>>, vector<8x8x256xf32>
    %cst = arith.constant dense<0.000000e+00> : vector<8x8xf32>
    %1 = vector.multi_reduction <add>, %0, %cst [2] : vector<8x8x256xf32> to vector<8x8xf32>
    %cst_2 = arith.constant 2.560000e+02 : f32
    %2 = vector.broadcast %cst_2 : f32 to vector<8x8xf32>
    %3 = arith.divf %1, %2 : vector<8x8xf32>
    %c0_3 = arith.constant 0 : index
    %c0_4 = arith.constant 0 : index
    %4 = vector.load %arg2[%c0_3, %c0_4] : memref<8x8xf32, #tpu.memory_space<vmem>>, vector<8x8xf32>
    tpu.vector_store %arg2[%c0_3, %c0_4], %3 {strides = array<i32>} : memref<8x8xf32, #tpu.memory_space<vmem>>, vector<8x8xf32>,
    return
  }
  func.func @transform_0(%arg0: i32) -> (i32, i32, i32) {
    %c0_i32 = arith.constant 0 : i32
    %c0_i32_0 = arith.constant 0 : i32
    %c0_i32_1 = arith.constant 0 : i32
    return %arg0, %c0_i32, %c0_i32_0 : i32, i32, i32
  }
  func.func @transform_1(%arg0: i32) -> (i32, i32) {
    %c0_i32 = arith.constant 0 : i32
    %c0_i32_0 = arith.constant 0 : i32
    return %arg0, %c0_i32 : i32, i32
  }
}

</mosaic_0001>

<llo_original>
// kernel: tpu_custom_call.1
$region0: #{tpu_custom_call.1}
  #allocation0 [shape = 'u32[]', space=smem, size = 0x4, offset = 0x4, fixed_abs, tag = 'smem constant byte address 0x4 - core index']
  #allocation1 [shape = 'u32[144,128]{1,0:T(1,128)}', space=vmem, size = 0x12000, scoped, tag = 'internal scratch']
  %s0 = inlined_call_operand.hbm [shape: f32[8,8,256], index: 0, kind: input, shape index: {}]
  %s1 = inlined_call_operand.hbm [shape: f32[8,8], index: 1, kind: output, shape index: {}]
  %s2 = sld [smem:[#allocation0]]
  $region18: #{tpu_custom_call.1} parent=0
    _
  %s4 = ssub.s32 1, %s2
  %s5 = scalar_select 0, %s4, %s2
  $region1: #{tpu_custom_call.1} parent=0
    #allocation2 [shape = 'u8[65536]{0}', space=vmem, size = 0x10000, scoped, tag = 'input window, operand 0, single buffered']
    #allocation3 [shape = 's32[1]{0}', space=sflag, size = 0x4, scoped, tag = 'scoped memory for tpu_custom_call.1']
    #allocation4 [shape = 's32[1]{0}', space=sflag, size = 0x4, scoped, tag = 'scoped memory for tpu_custom_call.1']
    #allocation5 [shape = 'u8[4096]{0}', space=vmem, size = 0x1000, scoped, tag = 'output window, operand 0, single buffered']
    %6 = vsyncpa [#allocation3], 0
    %7 = vsyncpa [#allocation4], 0
    // Predicated region
    $region2: #{tpu_custom_call.1} parent=1 // pred_check
      _
    $region3: #{tpu_custom_call.1} parent=1 // pred_check_branch
      %9 = sbr.rel (0) target = $region5
    $region4: #{tpu_custom_call.1} parent=1 // pred_region
      %s11 = ssub.s32 2048, 2048
      %12 = vsyncadd [#allocation3], %s11
      %s13 = sshll.u32 [#allocation2], 4
      %s14 = int_to_ptr.vmem [resolvable:$true] %s13
      %19 = dma.hbm_to_vmem [thread:$0]  %s0, 2048, %s14, [#allocation3], 256, 256, 16
    $region5: #{tpu_custom_call.1} parent=1 // pred_fallthru
      _
    // Predicated region
    $region6: #{tpu_custom_call.1} parent=1 // pred_check
      _
    $region7: #{tpu_custom_call.1} parent=1 // pred_check_branch
      %21 = sbr.rel (0) target = $region9
    $region8: #{tpu_custom_call.1} parent=1 // pred_region
      %22 = dma.done [#allocation3], 2048
    $region9: #{tpu_custom_call.1} parent=1 // pred_fallthru
      _
    %v23 = vld [vmem:[#allocation2] sm:$0xff]
    %v24 = vld [vmem:[#allocation2 + $0x8] sm:$0xff]
    %v25 = vld [vmem:[#allocation2 + $0x10] sm:$0xff]
    %v26 = vld [vmem:[#allocation2 + $0x18] sm:$0xff]
    %v27 = vld [vmem:[#allocation2 + $0x20] sm:$0xff]
    %v28 = vld [vmem:[#allocation2 + $0x28] sm:$0xff]
    %v29 = vld [vmem:[#allocation2 + $0x30] sm:$0xff]
    %v30 = vld [vmem:[#allocation2 + $0x38] sm:$0xff]
    %v31 = vld [vmem:[#allocation2 + $0x40] sm:$0xff]
    %v32 = vld [vmem:[#allocation2 + $0x48] sm:$0xff]
    %v33 = vld [vmem:[#allocation2 + $0x50] sm:$0xff]
    %v34 = vld [vmem:[#allocation2 + $0x58] sm:$0xff]
    %v35 = vld [vmem:[#allocation2 + $0x60] sm:$0xff]
    %v36 = vld [vmem:[#allocation2 + $0x68] sm:$0xff]
    %v37 = vld [vmem:[#allocation2 + $0x70] sm:$0xff]
    %v38 = vld [vmem:[#allocation2 + $0x78] sm:$0xff]
    %v39 = vadd.f32 %v23, %v24
    %40 = vadd.xlane.f32.xlu0 %v39
    %v41 = vpop.xlane.xlu0 %40
    %v42 = vadd.f32 %v25, %v26
    %43 = vadd.xlane.f32.xlu0 %v42
    %v44 = vpop.xlane.xlu0 %43
    %v45 = vadd.f32 %v27, %v28
    %46 = vadd.xlane.f32.xlu0 %v45
    %v47 = vpop.xlane.xlu0 %46
    %v48 = vadd.f32 %v29, %v30
    %49 = vadd.xlane.f32.xlu0 %v48
    %v50 = vpop.xlane.xlu0 %49
    %v51 = vadd.f32 %v31, %v32
    %52 = vadd.xlane.f32.xlu0 %v51
    %v53 = vpop.xlane.xlu0 %52
    %v54 = vadd.f32 %v33, %v34
    %55 = vadd.xlane.f32.xlu0 %v54
    %v56 = vpop.xlane.xlu0 %55
    %v57 = vadd.f32 %v35, %v36
    %58 = vadd.xlane.f32.xlu0 %v57
    %v59 = vpop.xlane.xlu0 %58
    %v60 = vadd.f32 %v37, %v38
    %61 = vadd.xlane.f32.xlu0 %v60
    %v62 = vpop.xlane.xlu0 %61
    %v63 = vrcp.pop 256.0
    %v64 = vmul.f32 %v41, %v63
    %v65 = vmul.f32 %v44, %v63
    %v66 = vmul.f32 %v47, %v63
    %v67 = vmul.f32 %v50, %v63
    %v68 = vmul.f32 %v53, %v63
    %v69 = vmul.f32 %v56, %v63
    %v70 = vmul.f32 %v59, %v63
    %v71 = vmul.f32 %v62, %v63
    %v80 = vlaneseq
    %v81 = vand.u32 %v80, 127
    %v82 = vlaneseq
    %v83 = vshrl.u32 %v82, 7
    %v84 = vsub.s32 %v81, %v83
    %v85 = vrot.slane %v64, %v84
    %v86 = vlaneseq
    %v87 = vshrl.u32 %v86, 7
    %v88 = vsub.s32 %v81, %v87
    %v89 = vrot.slane %v65, %v88
    %v90 = vlaneseq
    %v91 = vshrl.u32 %v90, 7
    %v92 = vsub.s32 %v81, %v91
    %v93 = vrot.slane %v66, %v92
    %v94 = vlaneseq
    %v95 = vshrl.u32 %v94, 7
    %v96 = vsub.s32 %v81, %v95
    %v97 = vrot.slane %v67, %v96
    %v98 = vlaneseq
    %v99 = vshrl.u32 %v98, 7
    %v100 = vsub.s32 %v81, %v99
    %v101 = vrot.slane %v68, %v100
    %v102 = vlaneseq
    %v103 = vshrl.u32 %v102, 7
    %v104 = vsub.s32 %v81, %v103
    %v105 = vrot.slane %v69, %v104
    %v106 = vlaneseq
    %v107 = vshrl.u32 %v106, 7
    %v108 = vsub.s32 %v81, %v107
    %v109 = vrot.slane %v70, %v108
    %v110 = vlaneseq
    %v111 = vshrl.u32 %v110, 7
    %v112 = vsub.s32 %v81, %v111
    %v113 = vrot.slane %v71, %v112
    %vm114 = vcmask 1041409
    %v115 = vsel %vm114, %v89, %v85
    %vm116 = vcmask 1042434
    %v117 = vsel %vm116, %v93, %v115
    %vm118 = vcmask 1043459
    %v119 = vsel %vm118, %v97, %v117
    %vm120 = vcmask 1044484
    %v121 = vsel %vm120, %v101, %v119
    %vm122 = vcmask 1045509
    %v123 = vsel %vm122, %v105, %v121
    %vm124 = vcmask 1046534
    %v125 = vsel %vm124, %v109, %v123
    %vm126 = vcmask 1047559
    %v127 = vsel %vm126, %v113, %v125
    %vm129 = vcmask 64512
    %130 = vst.msk [vmem:[#allocation5] sm:$0xff] %vm129, %v127
    // Predicated region
    $region10: #{tpu_custom_call.1} parent=1 // pred_check
      _
    $region11: #{tpu_custom_call.1} parent=1 // pred_check_branch
      %132 = sbr.rel (0) target = $region13
    $region12: #{tpu_custom_call.1} parent=1 // pred_region
      %s134 = ssub.s32 128, 128
      %135 = vsyncadd [#allocation4], %s134
      %s137 = sshll.u32 [#allocation5], 4
      %s138 = int_to_ptr.vmem [resolvable:$true] %s137
      %140 = dma.vmem_to_hbm [thread:$0]  %s138, 128, %s1, [#allocation4]
    $region13: #{tpu_custom_call.1} parent=1 // pred_fallthru
      _
    // Predicated region
    $region14: #{tpu_custom_call.1} parent=1 // pred_check
      _
    $region15: #{tpu_custom_call.1} parent=1 // pred_check_branch
      %142 = sbr.rel (0) target = $region17
    $region16: #{tpu_custom_call.1} parent=1 // pred_region
      %143 = dma.done [#allocation4], 128
    $region17: #{tpu_custom_call.1} parent=1 // pred_fallthru
      _
    %144 = vsyncpa [#allocation3], 1
    %145 = vsyncpa [#allocation4], 1

</llo_original>
